<compile_context>
chip_gen: v7x
topology: tpu7x:2x2x1
jax: 0.10.0
libtpu: 0.0.40
codegen_flags: <defaults>
</compile_context>

<pallas_src>
import jax
import jax.numpy as jnp
from jax.experimental import pallas as pl
from jax.experimental.pallas import tpu as pltpu


def _make_kernel(layer_meta, pool_k, l_pool, b_tile):
    """layer_meta: list of (K, Cin_kernel, Cout_pad, Lin, Lout) per ConvBn layer."""

    def kernel(x_ref, *refs):
        out_ref = refs[-1]
        param_refs = refs[:-1]

        # Activations are (L, B_TILE, C): L is the (free) major axis, B_TILE the sublane
        # axis, C the lane axis.
        h = x_ref[...].astype(jnp.float32)                    # (L0, B_TILE, C0)

        p = 0
        for (K, c_in, c_out, l_in, l_out) in layer_meta:
            w_ref = param_refs[p]                             # (K*Cin, Cout_pad)
            s_ref = param_refs[p + 1]                         # (1, Cout_pad)  folded BN scale
            b_ref = param_refs[p + 2]                         # (1, Cout_pad)  folded BN shift
            p += 3

            # im2col: K shifted views along the major axis (free), concatenated on lanes.
            views = [h[k:k + l_out] for k in range(K)]        # each (Lout, B_TILE, Cin)
            im2col = views[0] if K == 1 else jnp.concatenate(views, axis=-1)
            flat = im2col.reshape(l_out * b_tile, K * c_in)   # fold batch into M

            # Single fused MXU matmul per layer, f32 accumulation.
            acc = jnp.dot(flat.astype(w_ref.dtype), w_ref[...],
                          preferred_element_type=jnp.float32)  # (Lout*B_TILE, Cout_pad)

            # Folded BN + ReLU in f32 (full 128-lane vregs).
            z = jnp.maximum(acc * s_ref[...] + b_ref[...], 0.0)
            h = z.reshape(l_out, b_tile, c_out)

        # MaxPool1d(pool_k): non-overlapping windows, floor length, via reshape + reduce.
        c_out = h.shape[-1]
        hp = h[:l_pool * pool_k].reshape(l_pool, pool_k, b_tile, c_out)
        out_ref[...] = jnp.max(hp, axis=1)                    # (l_pool, B_TILE, Cout_pad)

    return kernel


def many_conv_maxpool(x_ncw, weights_folded, pool_k, *, b_tile=8,
                      matmul_dtype=jnp.float32, lane_pad=128):
    """x_ncw: (N, Cin, L) float32 (PyTorch Conv1d layout).

    weights_folded: list of (w_kio, scale, shift) per ConvBn layer where
      w_kio : (K, Cin, Cout)   conv weight transposed to channels-last
      scale : (Cout,)          gamma / sqrt(running_var + eps)
      shift : (Cout,)          beta + (conv_bias - running_mean) * scale
    Returns (N, Cout, L_pool) float32, matching ManyConvMaxPool.forward (eval mode).
    """
    N, C0, L0 = x_ncw.shape

    # (N, C, L) -> (L, N, C): batch on sublanes, channels on lanes, length free.
    x = jnp.transpose(x_ncw, (2, 0, 1)).astype(jnp.float32)
    n_pad = -(-N // b_tile) * b_tile
    if n_pad != N:
        x = jnp.pad(x, ((0, 0), (0, n_pad - N), (0, 0)))
    num_tiles = n_pad // b_tile

    # Pad every layer's out-channels to a lane-dense width (multiple of 128).
    max_cout = max(w.shape[2] for (w, _, _) in weights_folded)
    c_pad = -(-max_cout // lane_pad) * lane_pad

    layer_meta = []
    params = []
    in_specs = [pl.BlockSpec((L0, b_tile, C0), lambda n: (0, n, 0))]

    l_in = L0
    c_in = C0                  # channels as seen inside the kernel
    expected_cin = C0          # original (unpadded) channels expected by this layer
    last_c_out = None
    for (w_kio, scale, shift) in weights_folded:
        K, c_in_orig, c_out_orig = w_kio.shape
        assert c_in_orig == expected_cin
        l_out = l_in - K + 1

        # Zero-pad Cin (to the kernel's current channel width) and Cout (to c_pad),
        # then flatten to the fused (K*Cin, Cout_pad) matmul weight.
        w_pad = jnp.zeros((K, c_in, c_pad), jnp.float32)
        w_pad = w_pad.at[:, :c_in_orig, :c_out_orig].set(w_kio.astype(jnp.float32))
        w2d = w_pad.reshape(K * c_in, c_pad).astype(matmul_dtype)
        s_pad = jnp.zeros((1, c_pad), jnp.float32).at[0, :c_out_orig].set(
            scale.astype(jnp.float32))
        b_pad = jnp.zeros((1, c_pad), jnp.float32).at[0, :c_out_orig].set(
            shift.astype(jnp.float32))

        params += [w2d, s_pad, b_pad]
        # Constant index_maps: Pallas does not re-DMA these blocks across grid steps.
        in_specs += [pl.BlockSpec((K * c_in, c_pad), lambda n: (0, 0)),
                     pl.BlockSpec((1, c_pad), lambda n: (0, 0)),
                     pl.BlockSpec((1, c_pad), lambda n: (0, 0))]

        layer_meta.append((K, c_in, c_pad, l_in, l_out))
        l_in = l_out
        c_in = c_pad
        expected_cin = c_out_orig
        last_c_out = c_out_orig

    l_pool = l_in // pool_k
    kernel = _make_kernel(layer_meta, pool_k, l_pool, b_tile)

    out = pl.pallas_call(
        kernel,
        out_shape=jax.ShapeDtypeStruct((l_pool, n_pad, c_pad), jnp.float32),
        grid_spec=pltpu.PrefetchScalarGridSpec(
            num_scalar_prefetch=0,
            grid=(num_tiles,),
            in_specs=in_specs,
            out_specs=pl.BlockSpec((l_pool, b_tile, c_pad), lambda n: (0, n, 0)),
        ),
        compiler_params=pltpu.CompilerParams(dimension_semantics=("parallel",)),
    )(x, *params)

    # (l_pool, N_pad, C_pad) -> drop padding -> (N, Cout, l_pool)
    out = out[:, :N, :last_c_out]
    return jnp.transpose(out, (1, 2, 0))


def ref_forward(x_ncw, weights_folded, pool_k):
    """Pure-JAX reference with identical semantics (for correctness check)."""
    x = jnp.transpose(x_ncw, (0, 2, 1))
    for (w_kio, scale, shift) in weights_folded:
        K = w_kio.shape[0]
        Lout = x.shape[1] - K + 1
        acc = jnp.zeros((x.shape[0], Lout, w_kio.shape[2]), jnp.float32)
        for k in range(K):
            acc = acc + jnp.einsum('nlc,cd->nld', x[:, k:k + Lout, :], w_kio[k],
                                   precision=jax.lax.Precision.HIGHEST)
        x = jax.nn.relu(acc * scale[None, None, :] + shift[None, None, :])
    N, L, C = x.shape
    Lp = L // pool_k
    x = x[:, :Lp * pool_k, :].reshape(N, Lp, pool_k, C).max(axis=2)
    return jnp.transpose(x, (0, 2, 1))


if __name__ == "__main__":
    # Module config: ManyConvMaxPool(conv_count=2, maxpool_kernel=2,
    #                                in_channels=4, out_channels=8, kernel_size=3)
    # Batch of 16 so the kernel runs 2 parallel grid steps of B_TILE=8 samples each.
    N, C_IN, L = 16, 4, 16
    C_OUT = 8
    K = 3
    CONV_COUNT = 2
    POOL_K = 2
    EPS = 1e-5

    key = jax.random.PRNGKey(0)
    keys = jax.random.split(key, 1 + CONV_COUNT * 6)
    x = jax.random.normal(keys[0], (N, C_IN, L), jnp.float32)

    weights_folded = []
    c_in = C_IN
    ki = 1
    for _ in range(CONV_COUNT):
        # Conv1d params (PyTorch weight layout (Cout, Cin, K)), BN affine + running stats.
        w_oik = 0.3 * jax.random.normal(keys[ki], (C_OUT, c_in, K), jnp.float32); ki += 1
        conv_b = 0.1 * jax.random.normal(keys[ki], (C_OUT,), jnp.float32); ki += 1
        gamma = 1.0 + 0.2 * jax.random.normal(keys[ki], (C_OUT,), jnp.float32); ki += 1
        beta = 0.1 * jax.random.normal(keys[ki], (C_OUT,), jnp.float32); ki += 1
        r_mean = 0.1 * jax.random.normal(keys[ki], (C_OUT,), jnp.float32); ki += 1
        r_var = 0.5 + jax.random.uniform(keys[ki], (C_OUT,), jnp.float32); ki += 1

        inv_std = 1.0 / jnp.sqrt(r_var + EPS)
        scale = gamma * inv_std
        shift = beta + (conv_b - r_mean) * scale
        w_kio = jnp.transpose(w_oik, (2, 1, 0))     # (K, Cin, Cout) channels-last
        weights_folded.append((w_kio, scale, shift))
        c_in = C_OUT

    ref = ref_forward(x, weights_folded, POOL_K)
    expected_len = (L - CONV_COUNT * (K - 1)) // POOL_K

    # f32 matmul path (tight check against f32 reference).
    out = many_conv_maxpool(x, weights_folded, POOL_K, b_tile=8,
                            matmul_dtype=jnp.float32)
    out = jax.block_until_ready(out)
    assert out.shape == (N, C_OUT, expected_len), out.shape
    max_err = float(jnp.max(jnp.abs(out - ref)))
    if not jnp.allclose(out, ref, atol=1e-3, rtol=1e-3):
        raise AssertionError(f"Pallas kernel mismatch vs reference, max abs err = {max_err}")

    # bf16 MXU path (inference fast path: bf16 operands, f32 accumulation / BN / ReLU).
    out_bf16 = jax.block_until_ready(
        many_conv_maxpool(x, weights_folded, POOL_K, b_tile=8,
                          matmul_dtype=jnp.bfloat16))
    assert out_bf16.shape == (N, C_OUT, expected_len), out_bf16.shape
    max_err_bf16 = float(jnp.max(jnp.abs(out_bf16 - ref)))
    if not max_err_bf16 < 0.2:
        raise AssertionError(f"bf16 Pallas kernel far from reference, max abs err = {max_err_bf16}")

    print("KERNEL_OK")
</pallas_src>

<mosaic_0001>
module attributes {stable_mosaic.version = 11 : i64} {
  func.func @kernel(%arg0: i32, %arg1: memref<16x8x4xf32, #tpu.memory_space<vmem>>, %arg2: memref<12x128xf32, #tpu.memory_space<vmem>>, %arg3: memref<1x128xf32, #tpu.memory_space<vmem>>, %arg4: memref<1x128xf32, #tpu.memory_space<vmem>>, %arg5: memref<384x128xf32, #tpu.memory_space<vmem>>, %arg6: memref<1x128xf32, #tpu.memory_space<vmem>>, %arg7: memref<1x128xf32, #tpu.memory_space<vmem>>, %arg8: memref<6x8x128xf32, #tpu.memory_space<vmem>>) attributes {dimension_semantics = [#tpu.dimension_semantics<parallel>], iteration_bounds = array<i64: 2>, scalar_prefetch = 0 : i64, scratch_operands = 0 : i64, tpu.core_type = #tpu.core_type<tc>, window_params = [{transform_indices = @transform_0, window_bounds = array<i64: 16, 8, 4>}, {pipeline_mode = #tpu.pipeline_mode<synchronous>, transform_indices = @transform_1, window_bounds = array<i64: 12, 128>}, {pipeline_mode = #tpu.pipeline_mode<synchronous>, transform_indices = @transform_2, window_bounds = array<i64: 1, 128>}, {pipeline_mode = #tpu.pipeline_mode<synchronous>, transform_indices = @transform_3, window_bounds = array<i64: 1, 128>}, {pipeline_mode = #tpu.pipeline_mode<synchronous>, transform_indices = @transform_4, window_bounds = array<i64: 384, 128>}, {pipeline_mode = #tpu.pipeline_mode<synchronous>, transform_indices = @transform_5, window_bounds = array<i64: 1, 128>}, {pipeline_mode = #tpu.pipeline_mode<synchronous>, transform_indices = @transform_6, window_bounds = array<i64: 1, 128>}, {transform_indices = @transform_7, window_bounds = array<i64: 6, 8, 128>}]} {
    %c0 = arith.constant 0 : index
    %c0_0 = arith.constant 0 : index
    %c0_1 = arith.constant 0 : index
    %0 = vector.load %arg1[%c0, %c0_0, %c0_1] : memref<16x8x4xf32, #tpu.memory_space<vmem>>, vector<16x8x4xf32>
    %1 = vector.extract_strided_slice %0 {offsets = [0, 0, 0], sizes = [14, 8, 4], strides = [1, 1, 1]} : vector<16x8x4xf32> to vector<14x8x4xf32>
    %2 = vector.extract_strided_slice %0 {offsets = [1, 0, 0], sizes = [14, 8, 4], strides = [1, 1, 1]} : vector<16x8x4xf32> to vector<14x8x4xf32>
    %3 = vector.extract_strided_slice %0 {offsets = [2, 0, 0], sizes = [14, 8, 4], strides = [1, 1, 1]} : vector<16x8x4xf32> to vector<14x8x4xf32>
    %4 = tpu.concatenate %1, %2, %3 in 2 : vector<14x8x4xf32>, vector<14x8x4xf32>, vector<14x8x4xf32> -> vector<14x8x12xf32>
    %5 = vector.shape_cast %4 : vector<14x8x12xf32> to vector<112x12xf32>
    %c0_2 = arith.constant 0 : index
    %c0_3 = arith.constant 0 : index
    %6 = vector.load %arg2[%c0_2, %c0_3] : memref<12x128xf32, #tpu.memory_space<vmem>>, vector<12x128xf32>
    %cst = arith.constant dense<0.000000e+00> : vector<112x128xf32>
    %7 = tpu.matmul %5, %6, %cst {dimension_numbers = #tpu.dot_dimension_numbers<[1], [0], [0], [1], [0, 0, 1, 1], [], []>} : vector<112x12xf32>, vector<12x128xf32>, vector<112x128xf32> -> vector<112x128xf32>
    %c0_4 = arith.constant 0 : index
    %c0_5 = arith.constant 0 : index
    %8 = vector.load %arg3[%c0_4, %c0_5] : memref<1x128xf32, #tpu.memory_space<vmem>>, vector<1x128xf32>
    %9 = vector.broadcast %8 : vector<1x128xf32> to vector<112x128xf32>
    %10 = arith.mulf %7, %9 : vector<112x128xf32>
    %c0_6 = arith.constant 0 : index
    %c0_7 = arith.constant 0 : index
    %11 = vector.load %arg4[%c0_6, %c0_7] : memref<1x128xf32, #tpu.memory_space<vmem>>, vector<1x128xf32>
    %12 = vector.broadcast %11 : vector<1x128xf32> to vector<112x128xf32>
    %13 = arith.addf %10, %12 : vector<112x128xf32>
    %cst_8 = arith.constant 0.000000e+00 : f32
    %14 = vector.broadcast %cst_8 : f32 to vector<112x128xf32>
    %15 = arith.maximumf %13, %14 : vector<112x128xf32>
    %16 = vector.shape_cast %15 : vector<112x128xf32> to vector<14x8x128xf32>
    %17 = vector.extract_strided_slice %16 {offsets = [0, 0, 0], sizes = [12, 8, 128], strides = [1, 1, 1]} : vector<14x8x128xf32> to vector<12x8x128xf32>
    %18 = vector.extract_strided_slice %16 {offsets = [1, 0, 0], sizes = [12, 8, 128], strides = [1, 1, 1]} : vector<14x8x128xf32> to vector<12x8x128xf32>
    %19 = vector.extract_strided_slice %16 {offsets = [2, 0, 0], sizes = [12, 8, 128], strides = [1, 1, 1]} : vector<14x8x128xf32> to vector<12x8x128xf32>
    %20 = tpu.concatenate %17, %18, %19 in 2 : vector<12x8x128xf32>, vector<12x8x128xf32>, vector<12x8x128xf32> -> vector<12x8x384xf32>
    %21 = vector.shape_cast %20 : vector<12x8x384xf32> to vector<96x384xf32>
    %c0_9 = arith.constant 0 : index
    %c0_10 = arith.constant 0 : index
    %22 = vector.load %arg5[%c0_9, %c0_10] : memref<384x128xf32, #tpu.memory_space<vmem>>, vector<384x128xf32>
    %cst_11 = arith.constant dense<0.000000e+00> : vector<96x128xf32>
    %23 = tpu.matmul %21, %22, %cst_11 {dimension_numbers = #tpu.dot_dimension_numbers<[1], [0], [0], [1], [0, 0, 1, 1], [], []>} : vector<96x384xf32>, vector<384x128xf32>, vector<96x128xf32> -> vector<96x128xf32>
    %c0_12 = arith.constant 0 : index
    %c0_13 = arith.constant 0 : index
    %24 = vector.load %arg6[%c0_12, %c0_13] : memref<1x128xf32, #tpu.memory_space<vmem>>, vector<1x128xf32>
    %25 = vector.broadcast %24 : vector<1x128xf32> to vector<96x128xf32>
    %26 = arith.mulf %23, %25 : vector<96x128xf32>
    %c0_14 = arith.constant 0 : index
    %c0_15 = arith.constant 0 : index
    %27 = vector.load %arg7[%c0_14, %c0_15] : memref<1x128xf32, #tpu.memory_space<vmem>>, vector<1x128xf32>
    %28 = vector.broadcast %27 : vector<1x128xf32> to vector<96x128xf32>
    %29 = arith.addf %26, %28 : vector<96x128xf32>
    %cst_16 = arith.constant 0.000000e+00 : f32
    %30 = vector.broadcast %cst_16 : f32 to vector<96x128xf32>
    %31 = arith.maximumf %29, %30 : vector<96x128xf32>
    %32 = vector.shape_cast %31 : vector<96x128xf32> to vector<12x8x128xf32>
    %33 = vector.shape_cast %32 : vector<12x8x128xf32> to vector<6x2x8x128xf32>
    %cst_17 = arith.constant dense<0xFF800000> : vector<6x8x128xf32>
    %34 = vector.multi_reduction <maximumf>, %33, %cst_17 [1] : vector<6x2x8x128xf32> to vector<6x8x128xf32>
    %c0_18 = arith.constant 0 : index
    %c0_19 = arith.constant 0 : index
    %c0_20 = arith.constant 0 : index
    %35 = vector.load %arg8[%c0_18, %c0_19, %c0_20] : memref<6x8x128xf32, #tpu.memory_space<vmem>>, vector<6x8x128xf32>
    tpu.vector_store %arg8[%c0_18, %c0_19, %c0_20], %34 {strides = array<i32>} : memref<6x8x128xf32, #tpu.memory_space<vmem>>, vector<6x8x128xf32>,
    return
  }
  func.func @transform_0(%arg0: i32) -> (i32, i32, i32) {
    %c0_i32 = arith.constant 0 : i32
    %c0_i32_0 = arith.constant 0 : i32
    %c0_i32_1 = arith.constant 0 : i32
    return %c0_i32, %arg0, %c0_i32_0 : i32, i32, i32
  }
  func.func @transform_1(%arg0: i32) -> (i32, i32) {
    %c0_i32 = arith.constant 0 : i32
    %c0_i32_0 = arith.constant 0 : i32
    %c0_i32_1 = arith.constant 0 : i32
    return %c0_i32, %c0_i32_0 : i32, i32
  }
  func.func @transform_2(%arg0: i32) -> (i32, i32) {
    %c0_i32 = arith.constant 0 : i32
    %c0_i32_0 = arith.constant 0 : i32
    %c0_i32_1 = arith.constant 0 : i32
    return %c0_i32, %c0_i32_0 : i32, i32
  }
  func.func @transform_3(%arg0: i32) -> (i32, i32) {
    %c0_i32 = arith.constant 0 : i32
    %c0_i32_0 = arith.constant 0 : i32
    %c0_i32_1 = arith.constant 0 : i32
    return %c0_i32, %c0_i32_0 : i32, i32
  }
  func.func @transform_4(%arg0: i32) -> (i32, i32) {
    %c0_i32 = arith.constant 0 : i32
    %c0_i32_0 = arith.constant 0 : i32
    %c0_i32_1 = arith.constant 0 : i32
    return %c0_i32, %c0_i32_0 : i32, i32
  }
  func.func @transform_5(%arg0: i32) -> (i32, i32) {
    %c0_i32 = arith.constant 0 : i32
    %c0_i32_0 = arith.constant 0 : i32
    %c0_i32_1 = arith.constant 0 : i32
    return %c0_i32, %c0_i32_0 : i32, i32
  }
  func.func @transform_6(%arg0: i32) -> (i32, i32) {
    %c0_i32 = arith.constant 0 : i32
    %c0_i32_0 = arith.constant 0 : i32
    %c0_i32_1 = arith.constant 0 : i32
    return %c0_i32, %c0_i32_0 : i32, i32
  }
  func.func @transform_7(%arg0: i32) -> (i32, i32, i32) {
    %c0_i32 = arith.constant 0 : i32
    %c0_i32_0 = arith.constant 0 : i32
    %c0_i32_1 = arith.constant 0 : i32
    return %c0_i32, %arg0, %c0_i32_0 : i32, i32, i32
  }
}

</mosaic_0001>

<llo_original>
// kernel: tpu_custom_call.1
$region0: #{tpu_custom_call.1}
  #allocation0 [shape = 'u32[]', space=smem, size = 0x4, offset = 0x4, fixed_abs, tag = 'smem constant byte address 0x4 - core index']
  #allocation1 [shape = 'u32[144,128]{1,0:T(1,128)}', space=vmem, size = 0x12000, scoped, tag = 'internal scratch']
  %s0 = inlined_call_operand.vmem [shape: f32[16,16,4], index: 0, kind: input, shape index: {}]
  %s1 = inlined_call_operand.vmem [shape: f32[12,128], index: 1, kind: input, shape index: {}]
  %s2 = inlined_call_operand.vmem [shape: f32[1,128], index: 2, kind: input, shape index: {}]
  %s3 = inlined_call_operand.vmem [shape: f32[1,128], index: 3, kind: input, shape index: {}]
  %s4 = inlined_call_operand.hbm [shape: f32[384,128], index: 4, kind: input, shape index: {}]
  %s5 = inlined_call_operand.vmem [shape: f32[1,128], index: 5, kind: input, shape index: {}]
  %s6 = inlined_call_operand.vmem [shape: f32[1,128], index: 6, kind: input, shape index: {}]
  %s7 = inlined_call_operand.hbm [shape: f32[6,16,128], index: 7, kind: output, shape index: {}]
  %s8 = sld [smem:[#allocation0]]
  $region103: #{tpu_custom_call.1} parent=0
    _
  %s10 = ssub.s32 1, %s8
  %s11 = scalar_select 0, %s10, %s8
  $region1: #{tpu_custom_call.1} parent=0
    #allocation2 [shape = 'u8[131072]{0}', space=vmem, size = 0x20000, scoped, tag = 'input window, operand 0']
    #allocation3 [shape = 'u8[196608]{0}', space=vmem, size = 0x30000, scoped, tag = 'input window, operand 4, single buffered']
    #allocation4 [shape = 's32[2]{0}', space=sflag, size = 0x8, scoped, tag = 'scoped memory for tpu_custom_call.1']
    #allocation5 [shape = 's32[2]{0}', space=sflag, size = 0x8, scoped, tag = 'scoped memory for tpu_custom_call.1']
    #allocation6 [shape = 'u8[49152]{0}', space=vmem, size = 0xc000, scoped, tag = 'output window, operand 0']
    %12 = vsyncpa [#allocation4], 0
    %13 = vsyncpa [#allocation5], 0
    %s14 = scalar_lea.sflag [#allocation5], 1
    %15 = vsyncpa %s14, 0
    loop: start=0, step=1, limit=4
    $region2: #{tpu_custom_call.1} parent=1 // loop_pre_header
      _
    $region3: #{tpu_custom_call.1} parent=1 // loop_header
      %s17 = sphi 0, %s21
      %p18 = scmp.ge.s32.totalorder %s17, 4
      %s27 = sphi 0, %s29
      %s30 = sphi 0, %s27
      %s31 = sphi 0, %s30
      %s47 = sphi 0, %s31
      %s51 = sphi 0, %s51
      %s53 = sphi 0, %s51
      %s54 = sphi 0, %s53
      %s68 = sphi 0, %s54
      %s72 = sphi 0, %s72
      %s74 = sphi 0, %s72
      %s75 = sphi 0, %s74
      %s89 = sphi 0, %s75
      %s93 = sphi 0, %s93
      %s95 = sphi 0, %s93
      %s96 = sphi 0, %s95
      %s110 = sphi 0, %s96
      %s114 = sphi 0, %s114
      %s116 = sphi 0, %s114
      %s117 = sphi 0, %s116
      %s131 = sphi 0, %s117
      %s135 = sphi 0, %s135
      %s137 = sphi 0, %s135
      %s138 = sphi 0, %s137
      %s152 = sphi 0, %s138
      %s156 = sphi 0, %s156
      %s158 = sphi 0, %s156
      %s159 = sphi 0, %s158
      %s173 = sphi 0, %s159
      %s179 = sphi 0, %s181
      %s182 = sphi 0, %s179
      %s183 = sphi 0, %s182
      %s199 = sphi 0, %s183
    $region4: #{tpu_custom_call.1} parent=1 // loop_header_branch
      %20 = sbr.rel (%p18) target = $region8
    $region5: #{tpu_custom_call.1} parent=1 // loop_body
      %s22 = ssub.s32 %s17, 1
      %s23 = ssub.s32 %s17, 2
      %s24 = sadd.s32 %s17, 1
      %s25 = ssub.s32 %s17, %s24
      %p26 = scmp.eq.s32.totalorder %s25, 0
      %s28 = sadd.s32 %s27, 1
      %s29 = scalar_select %p26, %s27, %s28
      %p32 = pneg %p26
      %p33 = scmp.eq.s32.totalorder %s17, 1
      %p34 = por %p32, %p33
      %p35 = scmp.ne.s32.totalorder %s27, %s30
      %p36 = scmp.eq.s32.totalorder %s17, 0
      %p37 = por %p35, %p36
      %p38 = scmp.ne.s32.totalorder %s27, %s30
      %p39 = scmp.eq.s32.totalorder %s22, 1
      %p40 = por %p38, %p39
      %p41 = scmp.ne.s32.totalorder %s30, %s31
      %p42 = scmp.eq.s32.totalorder %s22, 0
      %p43 = por %p41, %p42
      %p44 = scmp.ne.s32.totalorder %s30, %s31
      %p45 = scmp.eq.s32.totalorder %s23, 1
      %p46 = por %p44, %p45
      %p48 = scmp.ne.s32.totalorder %s31, %s47
      %p49 = scmp.eq.s32.totalorder %s23, 0
      %p50 = por %p48, %p49
      %s52 = sadd.s32 %s51, 1
      %p55 = scmp.eq.s32.totalorder %s17, 1
      %p56 = scmp.ne.s32.totalorder %s51, %s53
      %p57 = scmp.eq.s32.totalorder %s17, 0
      %p58 = por %p56, %p57
      %p59 = scmp.ne.s32.totalorder %s51, %s53
      %p60 = scmp.eq.s32.totalorder %s22, 1
      %p61 = por %p59, %p60
      %p62 = scmp.ne.s32.totalorder %s53, %s54
      %p63 = scmp.eq.s32.totalorder %s22, 0
      %p64 = por %p62, %p63
      %p65 = scmp.ne.s32.totalorder %s53, %s54
      %p66 = scmp.eq.s32.totalorder %s23, 1
      %p67 = por %p65, %p66
      %p69 = scmp.ne.s32.totalorder %s54, %s68
      %p70 = scmp.eq.s32.totalorder %s23, 0
      %p71 = por %p69, %p70
      %s73 = sadd.s32 %s72, 1
      %p76 = scmp.eq.s32.totalorder %s17, 1
      %p77 = scmp.ne.s32.totalorder %s72, %s74
      %p78 = scmp.eq.s32.totalorder %s17, 0
      %p79 = por %p77, %p78
      %p80 = scmp.ne.s32.totalorder %s72, %s74
      %p81 = scmp.eq.s32.totalorder %s22, 1
      %p82 = por %p80, %p81
      %p83 = scmp.ne.s32.totalorder %s74, %s75
      %p84 = scmp.eq.s32.totalorder %s22, 0
      %p85 = por %p83, %p84
      %p86 = scmp.ne.s32.totalorder %s74, %s75
      %p87 = scmp.eq.s32.totalorder %s23, 1
      %p88 = por %p86, %p87
      %p90 = scmp.ne.s32.totalorder %s75, %s89
      %p91 = scmp.eq.s32.totalorder %s23, 0
      %p92 = por %p90, %p91
      %s94 = sadd.s32 %s93, 1
      %p97 = scmp.eq.s32.totalorder %s17, 1
      %p98 = scmp.ne.s32.totalorder %s93, %s95
      %p99 = scmp.eq.s32.totalorder %s17, 0
      %p100 = por %p98, %p99
      %p101 = scmp.ne.s32.totalorder %s93, %s95
      %p102 = scmp.eq.s32.totalorder %s22, 1
      %p103 = por %p101, %p102
      %p104 = scmp.ne.s32.totalorder %s95, %s96
      %p105 = scmp.eq.s32.totalorder %s22, 0
      %p106 = por %p104, %p105
      %p107 = scmp.ne.s32.totalorder %s95, %s96
      %p108 = scmp.eq.s32.totalorder %s23, 1
      %p109 = por %p107, %p108
      %p111 = scmp.ne.s32.totalorder %s96, %s110
      %p112 = scmp.eq.s32.totalorder %s23, 0
      %p113 = por %p111, %p112
      %s115 = sadd.s32 %s114, 1
      %p118 = scmp.eq.s32.totalorder %s17, 1
      %p119 = scmp.ne.s32.totalorder %s114, %s116
      %p120 = scmp.eq.s32.totalorder %s17, 0
      %p121 = por %p119, %p120
      %p122 = scmp.ne.s32.totalorder %s114, %s116
      %p123 = scmp.eq.s32.totalorder %s22, 1
      %p124 = por %p122, %p123
      %p125 = scmp.ne.s32.totalorder %s116, %s117
      %p126 = scmp.eq.s32.totalorder %s22, 0
      %p127 = por %p125, %p126
      %p128 = scmp.ne.s32.totalorder %s116, %s117
      %p129 = scmp.eq.s32.totalorder %s23, 1
      %p130 = por %p128, %p129
      %p132 = scmp.ne.s32.totalorder %s117, %s131
      %p133 = scmp.eq.s32.totalorder %s23, 0
      %p134 = por %p132, %p133
      %s136 = sadd.s32 %s135, 1
      %p139 = scmp.eq.s32.totalorder %s17, 1
      %p140 = scmp.ne.s32.totalorder %s135, %s137
      %p141 = scmp.eq.s32.totalorder %s17, 0
      %p142 = por %p140, %p141
      %p143 = scmp.ne.s32.totalorder %s135, %s137
      %p144 = scmp.eq.s32.totalorder %s22, 1
      %p145 = por %p143, %p144
      %p146 = scmp.ne.s32.totalorder %s137, %s138
      %p147 = scmp.eq.s32.totalorder %s22, 0
      %p148 = por %p146, %p147
      %p149 = scmp.ne.s32.totalorder %s137, %s138
      %p150 = scmp.eq.s32.totalorder %s23, 1
      %p151 = por %p149, %p150
      %p153 = scmp.ne.s32.totalorder %s138, %s152
      %p154 = scmp.eq.s32.totalorder %s23, 0
      %p155 = por %p153, %p154
      %s157 = sadd.s32 %s156, 1
      %p160 = scmp.eq.s32.totalorder %s17, 1
      %p161 = scmp.ne.s32.totalorder %s156, %s158
      %p162 = scmp.eq.s32.totalorder %s17, 0
      %p163 = por %p161, %p162
      %p164 = scmp.ne.s32.totalorder %s156, %s158
      %p165 = scmp.eq.s32.totalorder %s22, 1
      %p166 = por %p164, %p165
      %p167 = scmp.ne.s32.totalorder %s158, %s159
      %p168 = scmp.eq.s32.totalorder %s22, 0
      %p169 = por %p167, %p168
      %p170 = scmp.ne.s32.totalorder %s158, %s159
      %p171 = scmp.eq.s32.totalorder %s23, 1
      %p172 = por %p170, %p171
      %p174 = scmp.ne.s32.totalorder %s159, %s173
      %p175 = scmp.eq.s32.totalorder %s23, 0
      %p176 = por %p174, %p175
      %s177 = ssub.s32 %s17, %s24
      %p178 = scmp.eq.s32.totalorder %s177, 0
      %s180 = sadd.s32 %s179, 1
      %s181 = scalar_select %p178, %s179, %s180
      %p184 = pneg %p178
      %p185 = scmp.eq.s32.totalorder %s17, 1
      %p186 = por %p184, %p185
      %p187 = scmp.ne.s32.totalorder %s179, %s182
      %p188 = scmp.eq.s32.totalorder %s17, 0
      %p189 = por %p187, %p188
      %p190 = scmp.ne.s32.totalorder %s179, %s182
      %p191 = scmp.eq.s32.totalorder %s22, 1
      %p192 = por %p190, %p191
      %p193 = scmp.ne.s32.totalorder %s182, %s183
      %p194 = scmp.eq.s32.totalorder %s22, 0
      %p195 = por %p193, %p194
      %p196 = scmp.ne.s32.totalorder %s182, %s183
      %p197 = scmp.eq.s32.totalorder %s23, 1
      %p198 = por %p196, %p197
      %p200 = scmp.ne.s32.totalorder %s183, %s199
      %p201 = scmp.eq.s32.totalorder %s23, 0
      %p202 = por %p200, %p201
      %p203 = scmp.le.s32.totalorder 1, %s17
      %p204 = scmp.lt.s32.totalorder %s17, 3
      %p205 = pnand %p203, %p204
      %p206 = pneg %p205
      // Predicated region
      $region9: #{tpu_custom_call.1} parent=5 // pred_check
        _
      $region10: #{tpu_custom_call.1} parent=5 // pred_check_branch
        %208 = sbr.rel (%p205) target = $region12
      $region11: #{tpu_custom_call.1} parent=5 // pred_region
        %s209 = ssub.s32 %s17, 1
        // Predicated region
        $region13: #{tpu_custom_call.1} parent=11 // pred_check
          %p210 = pneg %p64
        $region14: #{tpu_custom_call.1} parent=11 // pred_check_branch
          %212 = sbr.rel (%p210) target = $region16
        $region15: #{tpu_custom_call.1} parent=11 // pred_region
          _
        $region16: #{tpu_custom_call.1} parent=11 // pred_fallthru
          _
        // Predicated region
        $region17: #{tpu_custom_call.1} parent=11 // pred_check
          %p213 = pneg %p85
        $region18: #{tpu_custom_call.1} parent=11 // pred_check_branch
          %215 = sbr.rel (%p213) target = $region20
        $region19: #{tpu_custom_call.1} parent=11 // pred_region
          _
        $region20: #{tpu_custom_call.1} parent=11 // pred_fallthru
          _
        // Predicated region
        $region21: #{tpu_custom_call.1} parent=11 // pred_check
          %p216 = pneg %p106
        $region22: #{tpu_custom_call.1} parent=11 // pred_check_branch
          %218 = sbr.rel (%p216) target = $region24
        $region23: #{tpu_custom_call.1} parent=11 // pred_region
          _
        $region24: #{tpu_custom_call.1} parent=11 // pred_fallthru
          _
        // Predicated region
        $region25: #{tpu_custom_call.1} parent=11 // pred_check
          %p219 = pneg %p127
        $region26: #{tpu_custom_call.1} parent=11 // pred_check_branch
          %221 = sbr.rel (%p219) target = $region28
        $region27: #{tpu_custom_call.1} parent=11 // pred_region
          %s223 = ssub.s32 6144, 6144
          %224 = vsyncadd [#allocation4], %s223
          %s225 = sshll.u32 [#allocation3], 4
          %s226 = int_to_ptr.vmem [resolvable:$true] %s225
          %231 = dma.hbm_to_vmem [thread:$0]  %s4, 6144, %s226, [#allocation4], 128, 128, 8
        $region28: #{tpu_custom_call.1} parent=11 // pred_fallthru
          _
        // Predicated region
        $region29: #{tpu_custom_call.1} parent=11 // pred_check
          %p232 = pneg %p148
        $region30: #{tpu_custom_call.1} parent=11 // pred_check_branch
          %234 = sbr.rel (%p232) target = $region32
        $region31: #{tpu_custom_call.1} parent=11 // pred_region
          _
        $region32: #{tpu_custom_call.1} parent=11 // pred_fallthru
          _
        // Predicated region
        $region33: #{tpu_custom_call.1} parent=11 // pred_check
          %p235 = pneg %p169
        $region34: #{tpu_custom_call.1} parent=11 // pred_check_branch
          %237 = sbr.rel (%p235) target = $region36
        $region35: #{tpu_custom_call.1} parent=11 // pred_region
          _
        $region36: #{tpu_custom_call.1} parent=11 // pred_fallthru
          _
      $region12: #{tpu_custom_call.1} parent=5 // pred_fallthru
        _
      %p238 = scmp.lt.s32.totalorder %s17, 2
      // Predicated region
      $region37: #{tpu_custom_call.1} parent=5 // pred_check
        %p239 = pneg %p238
      $region38: #{tpu_custom_call.1} parent=5 // pred_check_branch
        %241 = sbr.rel (%p239) target = $region40
      $region39: #{tpu_custom_call.1} parent=5 // pred_region
        // Predicated region
        $region41: #{tpu_custom_call.1} parent=39 // pred_check
          %p242 = pneg %p37
        $region42: #{tpu_custom_call.1} parent=39 // pred_check_branch
          %244 = sbr.rel (%p242) target = $region44
        $region43: #{tpu_custom_call.1} parent=39 // pred_region
          %s245 = sand.u32 %s27, 1
          %s246 = sand.u32 %s27, 1
          %s247 = smul.addr %s246, 128
          %s248 = scalar_lea.vmem [#allocation2], %s247
          %s249 = smul.addr %s17, 8
          %s250 = scalar_lea.vmem %s0, %s249
          // Predicated region
          $region45: #{tpu_custom_call.1} parent=43 // pred_check
            _
          $region46: #{tpu_custom_call.1} parent=43 // pred_check_branch
            %252 = sbr.rel (0) target = $region48
          $region47: #{tpu_custom_call.1} parent=43 // pred_region
            // Predicated region
            $region49: #{tpu_custom_call.1} parent=47 // pred_check
              _
            $region50: #{tpu_custom_call.1} parent=47 // pred_check_branch
              %254 = sbr.rel (0) target = $region52
            $region51: #{tpu_custom_call.1} parent=47 // pred_region
              // Predicated region
              $region64: #{tpu_custom_call.1} parent=51 // pred_check
                _
              $region65: #{tpu_custom_call.1} parent=51 // pred_check_branch
                %299 = sbr.rel (0) target = $region67
              $region66: #{tpu_custom_call.1} parent=51 // pred_region
                loop: start=0, step=1, limit=1
                $region68: #{tpu_custom_call.1} parent=66 // loop_pre_header
                  _
                $region69: #{tpu_custom_call.1} parent=66 // loop_header
                  %s301 = sphi 0, %s305
                  %p302 = scmp.ge.s32.totalorder %s301, 1
                  %s306 = sphi %s250, %s250
                  %s307 = sphi %s248, %s248
                $region70: #{tpu_custom_call.1} parent=66 // loop_header_branch
                  %304 = sbr.rel (%p302) target = $region74
                $region71: #{tpu_custom_call.1} parent=66 // loop_body
                  %v308 = vld [vmem:[%s306] sm:$0xff]
                  %309 = vst [vmem:[%s307] sm:$0xff] %v308
                  %v310 = vld [vmem:[%s306 + $0x10] sm:$0xff]
                  %311 = vst [vmem:[%s307 + $0x8] sm:$0xff] %v310
                  %v312 = vld [vmem:[%s306 + $0x20] sm:$0xff]
                  %313 = vst [vmem:[%s307 + $0x10] sm:$0xff] %v312
                  %v314 = vld [vmem:[%s306 + $0x30] sm:$0xff]
                  %315 = vst [vmem:[%s307 + $0x18] sm:$0xff] %v314
                  %v316 = vld [vmem:[%s306 + $0x40] sm:$0xff]
                  %317 = vst [vmem:[%s307 + $0x20] sm:$0xff] %v316
                  %v318 = vld [vmem:[%s306 + $0x50] sm:$0xff]
                  %319 = vst [vmem:[%s307 + $0x28] sm:$0xff] %v318
                  %v320 = vld [vmem:[%s306 + $0x60] sm:$0xff]
                  %321 = vst [vmem:[%s307 + $0x30] sm:$0xff] %v320
                  %v322 = vld [vmem:[%s306 + $0x70] sm:$0xff]
                  %323 = vst [vmem:[%s307 + $0x38] sm:$0xff] %v322
                  %v324 = vld [vmem:[%s306 + $0x80] sm:$0xff]
                  %325 = vst [vmem:[%s307 + $0x40] sm:$0xff] %v324
                  %v326 = vld [vmem:[%s306 + $0x90] sm:$0xff]
                  %327 = vst [vmem:[%s307 + $0x48] sm:$0xff] %v326
                  %v328 = vld [vmem:[%s306 + $0xa0] sm:$0xff]
                  %329 = vst [vmem:[%s307 + $0x50] sm:$0xff] %v328
                  %v330 = vld [vmem:[%s306 + $0xb0] sm:$0xff]
                  %331 = vst [vmem:[%s307 + $0x58] sm:$0xff] %v330
                  %v332 = vld [vmem:[%s306 + $0xc0] sm:$0xff]
                  %333 = vst [vmem:[%s307 + $0x60] sm:$0xff] %v332
                  %v334 = vld [vmem:[%s306 + $0xd0] sm:$0xff]
                  %335 = vst [vmem:[%s307 + $0x68] sm:$0xff] %v334
                  %v336 = vld [vmem:[%s306 + $0xe0] sm:$0xff]
                  %337 = vst [vmem:[%s307 + $0x70] sm:$0xff] %v336
                  %v338 = vld [vmem:[%s306 + $0xf0] sm:$0xff]
                  %339 = vst [vmem:[%s307 + $0x78] sm:$0xff] %v338
                $region72: #{tpu_custom_call.1} parent=66 // loop_footer
                  %s305 = sadd.s32 1, %s301
                $region73: #{tpu_custom_call.1} parent=66 // loop_footer_branch
                  %300 = sbr.rel target = $region69
                $region74: #{tpu_custom_call.1} parent=66 // loop_exit
                  _
              $region67: #{tpu_custom_call.1} parent=51 // pred_fallthru
                _
              // Predicated region
              $region75: #{tpu_custom_call.1} parent=51 // pred_check
                _
              $region76: #{tpu_custom_call.1} parent=51 // pred_check_branch
                %341 = sbr.rel target = $region78
              $region77: #{tpu_custom_call.1} parent=51 // pred_region
                _
              $region78: #{tpu_custom_call.1} parent=51 // pred_fallthru
                _
            $region52: #{tpu_custom_call.1} parent=47 // pred_fallthru
              _
            // Predicated region
            $region53: #{tpu_custom_call.1} parent=47 // pred_check
              _
            $region54: #{tpu_custom_call.1} parent=47 // pred_check_branch
              %256 = sbr.rel target = $region56
            $region55: #{tpu_custom_call.1} parent=47 // pred_region
              loop: start=0, step=1, limit=1
              $region57: #{tpu_custom_call.1} parent=55 // loop_pre_header
                _
              $region58: #{tpu_custom_call.1} parent=55 // loop_header
                %s259 = sphi 0, %s263
                %p260 = scmp.ge.s32.totalorder %s259, 1
                %s264 = sphi %s250, %s250
                %s265 = sphi %s248, %s248
              $region59: #{tpu_custom_call.1} parent=55 // loop_header_branch
                %262 = sbr.rel (%p260) target = $region63
              $region60: #{tpu_custom_call.1} parent=55 // loop_body
                %v266 = vld [vmem:[%s264] sm:$0xff]
                %267 = vst [vmem:[%s265] sm:$0xff] %v266
                %v268 = vld [vmem:[%s264 + $0x10] sm:$0xff]
                %269 = vst [vmem:[%s265 + $0x8] sm:$0xff] %v268
                %v270 = vld [vmem:[%s264 + $0x20] sm:$0xff]
                %271 = vst [vmem:[%s265 + $0x10] sm:$0xff] %v270
                %v272 = vld [vmem:[%s264 + $0x30] sm:$0xff]
                %273 = vst [vmem:[%s265 + $0x18] sm:$0xff] %v272
                %v274 = vld [vmem:[%s264 + $0x40] sm:$0xff]
                %275 = vst [vmem:[%s265 + $0x20] sm:$0xff] %v274
                %v276 = vld [vmem:[%s264 + $0x50] sm:$0xff]
                %277 = vst [vmem:[%s265 + $0x28] sm:$0xff] %v276
                %v278 = vld [vmem:[%s264 + $0x60] sm:$0xff]
                %279 = vst [vmem:[%s265 + $0x30] sm:$0xff] %v278
                %v280 = vld [vmem:[%s264 + $0x70] sm:$0xff]
                %281 = vst [vmem:[%s265 + $0x38] sm:$0xff] %v280
                %v282 = vld [vmem:[%s264 + $0x80] sm:$0xff]
                %283 = vst [vmem:[%s265 + $0x40] sm:$0xff] %v282
                %v284 = vld [vmem:[%s264 + $0x90] sm:$0xff]
                %285 = vst [vmem:[%s265 + $0x48] sm:$0xff] %v284
                %v286 = vld [vmem:[%s264 + $0xa0] sm:$0xff]
                %287 = vst [vmem:[%s265 + $0x50] sm:$0xff] %v286
                %v288 = vld [vmem:[%s264 + $0xb0] sm:$0xff]
                %289 = vst [vmem:[%s265 + $0x58] sm:$0xff] %v288
                %v290 = vld [vmem:[%s264 + $0xc0] sm:$0xff]
                %291 = vst [vmem:[%s265 + $0x60] sm:$0xff] %v290
                %v292 = vld [vmem:[%s264 + $0xd0] sm:$0xff]
                %293 = vst [vmem:[%s265 + $0x68] sm:$0xff] %v292
                %v294 = vld [vmem:[%s264 + $0xe0] sm:$0xff]
                %295 = vst [vmem:[%s265 + $0x70] sm:$0xff] %v294
                %v296 = vld [vmem:[%s264 + $0xf0] sm:$0xff]
                %297 = vst [vmem:[%s265 + $0x78] sm:$0xff] %v296
              $region61: #{tpu_custom_call.1} parent=55 // loop_footer
                %s263 = sadd.s32 1, %s259
              $region62: #{tpu_custom_call.1} parent=55 // loop_footer_branch
                %258 = sbr.rel target = $region58
              $region63: #{tpu_custom_call.1} parent=55 // loop_exit
                _
            $region56: #{tpu_custom_call.1} parent=47 // pred_fallthru
              _
          $region48: #{tpu_custom_call.1} parent=43 // pred_fallthru
            _
          %342 = vnop
        $region44: #{tpu_custom_call.1} parent=39 // pred_fallthru
          _
      $region40: #{tpu_custom_call.1} parent=5 // pred_fallthru
        _
      %p343 = scmp.le.s32.totalorder 1, %s17
      %p344 = scmp.lt.s32.totalorder %s17, 3
      %p345 = pnand %p343, %p344
      %p346 = pneg %p345
      // Predicated region
      $region79: #{tpu_custom_call.1} parent=5 // pred_check
        _
      $region80: #{tpu_custom_call.1} parent=5 // pred_check_branch
        %348 = sbr.rel (%p345) target = $region82
      $region81: #{tpu_custom_call.1} parent=5 // pred_region
        %s349 = ssub.s32 %s17, 1
        %s350 = sand.u32 %s30, 1
        %s351 = sand.u32 %s30, 1
        %s352 = smul.addr %s351, 128
        %s353 = scalar_lea.vmem [#allocation2], %s352
        // Predicated region
        $region83: #{tpu_custom_call.1} parent=81 // pred_check
          %p354 = pneg %p43
        $region84: #{tpu_custom_call.1} parent=81 // pred_check_branch
          %356 = sbr.rel (%p354) target = $region86
        $region85: #{tpu_custom_call.1} parent=81 // pred_region
          _
        $region86: #{tpu_custom_call.1} parent=81 // pred_fallthru
          _
        // Predicated region
        $region87: #{tpu_custom_call.1} parent=81 // pred_check
          %p357 = pneg %p127
        $region88: #{tpu_custom_call.1} parent=81 // pred_check_branch
          %359 = sbr.rel (%p357) target = $region90
        $region89: #{tpu_custom_call.1} parent=81 // pred_region
          %360 = dma.done [#allocation4], 6144
        $region90: #{tpu_custom_call.1} parent=81 // pred_fallthru
          _
        %s361 = sand.u32 %s30, 1
        %s362 = sand.u32 %s30, 1
        %s363 = smul.addr %s362, 128
        %s364 = scalar_lea.vmem [#allocation2], %s363
        %p365 = pneg %p43
        %p366 = pneg %p40
        %p367 = pneg %p64
        %p368 = pneg %p61
        %p369 = pneg %p85
        %p370 = pneg %p82
        %p371 = pneg %p106
        %p372 = pneg %p103
        %p373 = pneg %p127
        %p374 = pneg %p124
        %p375 = pneg %p148
        %p376 = pneg %p145
        %p377 = pneg %p169
        %p378 = pneg %p166
        %p379 = pneg %p195
        %p380 = pneg %p192
        %s381 = sand.u32 %s182, 1
        %s382 = scalar_lea.sflag [#allocation5], %s381
        %s383 = sand.u32 %s182, 1
        %s384 = smul.addr %s383, 48
        %s385 = scalar_lea.vmem [#allocation6], %s384
        %v386 = vld [vmem:[%s353] sm:$0xff]
        %v387 = vld [vmem:[%s353 + $0x8] sm:$0xff]
        %v388 = vld [vmem:[%s353 + $0x10] sm:$0xff]
        %v389 = vld [vmem:[%s353 + $0x18] sm:$0xff]
        %v390 = vld [vmem:[%s353 + $0x20] sm:$0xff]
        %v391 = vld [vmem:[%s353 + $0x28] sm:$0xff]
        %v392 = vld [vmem:[%s353 + $0x30] sm:$0xff]
        %v393 = vld [vmem:[%s353 + $0x38] sm:$0xff]
        %v394 = vld [vmem:[%s353 + $0x40] sm:$0xff]
        %v395 = vld [vmem:[%s353 + $0x48] sm:$0xff]
        %v396 = vld [vmem:[%s353 + $0x50] sm:$0xff]
        %v397 = vld [vmem:[%s353 + $0x58] sm:$0xff]
        %v398 = vld [vmem:[%s353 + $0x60] sm:$0xff]
        %v399 = vld [vmem:[%s353 + $0x68] sm:$0xff]
        %v400 = vld [vmem:[%s353 + $0x70] sm:$0xff]
        %v401 = vld [vmem:[%s353 + $0x78] sm:$0xff]
        %416 = vrot.lane.b32.xlu0 %v387, 4
        %v417 = vpop.permute.xlu0 %416
        %418 = vrot.lane.b32.xlu0 %v388, 4
        %v419 = vpop.permute.xlu0 %418
        %420 = vrot.lane.b32.xlu0 %v389, 4
        %v421 = vpop.permute.xlu0 %420
        %422 = vrot.lane.b32.xlu0 %v390, 4
        %v423 = vpop.permute.xlu0 %422
        %424 = vrot.lane.b32.xlu0 %v391, 4
        %v425 = vpop.permute.xlu0 %424
        %426 = vrot.lane.b32.xlu0 %v392, 4
        %v427 = vpop.permute.xlu0 %426
        %428 = vrot.lane.b32.xlu0 %v393, 4
        %v429 = vpop.permute.xlu0 %428
        %430 = vrot.lane.b32.xlu0 %v394, 4
        %v431 = vpop.permute.xlu0 %430
        %432 = vrot.lane.b32.xlu0 %v395, 4
        %v433 = vpop.permute.xlu0 %432
        %434 = vrot.lane.b32.xlu0 %v396, 4
        %v435 = vpop.permute.xlu0 %434
        %436 = vrot.lane.b32.xlu0 %v397, 4
        %v437 = vpop.permute.xlu0 %436
        %438 = vrot.lane.b32.xlu0 %v398, 4
        %v439 = vpop.permute.xlu0 %438
        %440 = vrot.lane.b32.xlu0 %v399, 4
        %v441 = vpop.permute.xlu0 %440
        %442 = vrot.lane.b32.xlu0 %v400, 4
        %v443 = vpop.permute.xlu0 %442
        %459 = vrot.lane.b32.xlu0 %v388, 8
        %v460 = vpop.permute.xlu0 %459
        %461 = vrot.lane.b32.xlu0 %v389, 8
        %v462 = vpop.permute.xlu0 %461
        %463 = vrot.lane.b32.xlu0 %v390, 8
        %v464 = vpop.permute.xlu0 %463
        %465 = vrot.lane.b32.xlu0 %v391, 8
        %v466 = vpop.permute.xlu0 %465
        %467 = vrot.lane.b32.xlu0 %v392, 8
        %v468 = vpop.permute.xlu0 %467
        %469 = vrot.lane.b32.xlu0 %v393, 8
        %v470 = vpop.permute.xlu0 %469
        %471 = vrot.lane.b32.xlu0 %v394, 8
        %v472 = vpop.permute.xlu0 %471
        %473 = vrot.lane.b32.xlu0 %v395, 8
        %v474 = vpop.permute.xlu0 %473
        %475 = vrot.lane.b32.xlu0 %v396, 8
        %v476 = vpop.permute.xlu0 %475
        %477 = vrot.lane.b32.xlu0 %v397, 8
        %v478 = vpop.permute.xlu0 %477
        %479 = vrot.lane.b32.xlu0 %v398, 8
        %v480 = vpop.permute.xlu0 %479
        %481 = vrot.lane.b32.xlu0 %v399, 8
        %v482 = vpop.permute.xlu0 %481
        %483 = vrot.lane.b32.xlu0 %v400, 8
        %v484 = vpop.permute.xlu0 %483
        %485 = vrot.lane.b32.xlu0 %v401, 8
        %v486 = vpop.permute.xlu0 %485
        %vm501 = vcmask 31744
        %v502 = vsel %vm501, %v386, %v417
        %v503 = vsel %vm501, %v387, %v419
        %v504 = vsel %vm501, %v388, %v421
        %v505 = vsel %vm501, %v389, %v423
        %v506 = vsel %vm501, %v390, %v425
        %v507 = vsel %vm501, %v391, %v427
        %v508 = vsel %vm501, %v392, %v429
        %v509 = vsel %vm501, %v393, %v431
        %v510 = vsel %vm501, %v394, %v433
        %v511 = vsel %vm501, %v395, %v435
        %v512 = vsel %vm501, %v396, %v437
        %v513 = vsel %vm501, %v397, %v439
        %v514 = vsel %vm501, %v398, %v441
        %v515 = vsel %vm501, %v399, %v443
        %vm516 = vcmask 64512
        %v517 = vsel %vm516, %v502, %v460
        %v518 = vsel %vm516, %v503, %v462
        %v519 = vsel %vm516, %v504, %v464
        %v520 = vsel %vm516, %v505, %v466
        %v521 = vsel %vm516, %v506, %v468
        %v522 = vsel %vm516, %v507, %v470
        %v523 = vsel %vm516, %v508, %v472
        %v524 = vsel %vm516, %v509, %v474
        %v525 = vsel %vm516, %v510, %v476
        %v526 = vsel %vm516, %v511, %v478
        %v527 = vsel %vm516, %v512, %v480
        %v528 = vsel %vm516, %v513, %v482
        %v529 = vsel %vm516, %v514, %v484
        %v530 = vsel %vm516, %v515, %v486
        %v531 = vld [vmem:[%s1] sm:$0xff]
        %v532 = vld [vmem:[%s1 + $0x8] sm:$0xf]
        %vm533 = vcmask 97280
        %v535 = vsel %vm533, %v517, 0
        %v538 = vsel %vm533, %v518, 0
        %v541 = vsel %vm533, %v519, 0
        %v544 = vsel %vm533, %v520, 0
        %v547 = vsel %vm533, %v521, 0
        %v550 = vsel %vm533, %v522, 0
        %v553 = vsel %vm533, %v523, 0
        %v556 = vsel %vm533, %v524, 0
        %v559 = vsel %vm533, %v525, 0
        %v562 = vsel %vm533, %v526, 0
        %v565 = vsel %vm533, %v527, 0
        %v568 = vsel %vm533, %v528, 0
        %v571 = vsel %vm533, %v529, 0
        %v574 = vsel %vm533, %v530, 0
        %vm576 = vcmask 1043456
        %v578 = vsel %vm576, %v532, 0
        %580 = vmatprep.subr.mxu0 0.0
        %581 = vmatpush1.msra.mxu0 %v531
        %582 = vmatprep.subr.mxu0 0.0
        %583 = vmatpush1.msra.mxu0 %v578
        %584 = vmatprep.subr.mxu0 0.0
        %585 = vmatpush1.msra.mxu0 0.0
        %586 = vmatprep.subr.mxu0 0.0
        %587 = vmatpush1.msra.mxu0 0.0
        %588 = vmatprep.subr.mxu0 0.0
        %589 = vmatpush1.msra.mxu0 0.0
        %590 = vmatprep.subr.mxu0 0.0
        %591 = vmatpush1.msra.mxu0 0.0
        %592 = vmatprep.subr.mxu0 0.0
        %593 = vmatpush1.msra.mxu0 0.0
        %594 = vmatprep.subr.mxu0 0.0
        %595 = vmatpush1.msra.mxu0 0.0
        %596 = vmatprep.subr.mxu0 0.0
        %597 = vmatpush1.msra.mxu0 0.0
        %598 = vmatprep.subr.mxu0 0.0
        %599 = vmatpush1.msra.mxu0 0.0
        %600 = vmatprep.subr.mxu0 0.0
        %601 = vmatpush1.msra.mxu0 0.0
        %602 = vmatprep.subr.mxu0 0.0
        %603 = vmatpush1.msra.mxu0 0.0
        %604 = vmatprep.subr.mxu0 0.0
        %605 = vmatpush1.msra.mxu0 0.0
        %606 = vmatprep.subr.mxu0 0.0
        %607 = vmatpush1.msra.mxu0 0.0
        %608 = vmatprep.subr.mxu0 0.0
        %609 = vmatpush1.msra.mxu0 0.0
        %610 = vmatprep.subr.mxu0 0.0
        %611 = vmatpush1.msra.mxu0 0.0
        %612 = vmatprep.subr.mxu0 0.0
        %613 = vmatpush1.msra.mxu0 0.0
        %614 = vmatprep.subr.mxu0 0.0
        %615 = vmatpush1.msra.mxu0 0.0
        %616 = vmatprep.subr.mxu0 0.0
        %617 = vmatpush1.msra.mxu0 0.0
        %618 = vmatprep.subr.mxu0 0.0
        %619 = vmatpush1.msra.mxu0 0.0
        %620 = vmatprep.subr.mxu0 0.0
        %621 = vmatpush1.msra.mxu0 0.0
        %622 = vmatprep.subr.mxu0 0.0
        %623 = vmatpush1.msra.mxu0 0.0
        %624 = vmatprep.subr.mxu0 0.0
        %625 = vmatpush1.msra.mxu0 0.0
        %626 = vmatprep.subr.mxu0 0.0
        %627 = vmatpush1.msra.mxu0 0.0
        %628 = vmatprep.subr.mxu0 0.0
        %629 = vmatpush1.msra.mxu0 0.0
        %630 = vmatprep.subr.mxu0 0.0
        %631 = vmatpush1.msra.mxu0 0.0
        %632 = vmatprep.subr.mxu0 0.0
        %633 = vmatpush1.msra.mxu0 0.0
        %634 = vmatprep.subr.mxu0 0.0
        %635 = vmatpush1.msra.mxu0 0.0
        %636 = vmatprep.subr.mxu0 0.0
        %637 = vmatpush1.msra.mxu0 0.0
        %638 = vmatprep.subr.mxu0 0.0
        %639 = vmatpush1.msra.mxu0 0.0
        %640 = vmatprep.subr.mxu0 0.0
        %641 = vmatpush1.msra.mxu0 0.0
        %642 = vmatprep.subr.mxu0 0.0
        %643 = vmatpush1.msra.mxu0 0.0
        %644 = vmatprep.mubr.f32.mxu0 0.0
        %645 = vmatmul.mubr.f32.gmra.mrb[0].mxu0 %v535
        %v646 = vpop.f32.mrb[0].mxu0
        %v647 = vadd.f32 0.0, %v646
        %v648 = vpop.f32.mrb[0].mxu0
        %649 = vmatprep.mubr.f32.mxu0 0.0
        %650 = vmatmul.mubr.f32.gmra.mrb[0].mxu0 %v538
        %v651 = vpop.f32.mrb[0].mxu0
        %v652 = vadd.f32 0.0, %v651
        %v653 = vpop.f32.mrb[0].mxu0
        %654 = vmatprep.mubr.f32.mxu0 0.0
        %655 = vmatmul.mubr.f32.gmra.mrb[0].mxu0 %v541
        %v656 = vpop.f32.mrb[0].mxu0
        %v657 = vadd.f32 0.0, %v656
        %v658 = vpop.f32.mrb[0].mxu0
        %659 = vmatprep.mubr.f32.mxu0 0.0
        %660 = vmatmul.mubr.f32.gmra.mrb[0].mxu0 %v544
        %v661 = vpop.f32.mrb[0].mxu0
        %v662 = vadd.f32 0.0, %v661
        %v663 = vpop.f32.mrb[0].mxu0
        %664 = vmatprep.mubr.f32.mxu0 0.0
        %665 = vmatmul.mubr.f32.gmra.mrb[0].mxu0 %v547
        %v666 = vpop.f32.mrb[0].mxu0
        %v667 = vadd.f32 0.0, %v666
        %v668 = vpop.f32.mrb[0].mxu0
        %669 = vmatprep.mubr.f32.mxu0 0.0
        %670 = vmatmul.mubr.f32.gmra.mrb[0].mxu0 %v550
        %v671 = vpop.f32.mrb[0].mxu0
        %v672 = vadd.f32 0.0, %v671
        %v673 = vpop.f32.mrb[0].mxu0
        %674 = vmatprep.mubr.f32.mxu0 0.0
        %675 = vmatmul.mubr.f32.gmra.mrb[0].mxu0 %v553
        %v676 = vpop.f32.mrb[0].mxu0
        %v677 = vadd.f32 0.0, %v676
        %v678 = vpop.f32.mrb[0].mxu0
        %679 = vmatprep.mubr.f32.mxu0 0.0
        %680 = vmatmul.mubr.f32.gmra.mrb[0].mxu0 %v556
        %v681 = vpop.f32.mrb[0].mxu0
        %v682 = vadd.f32 0.0, %v681
        %v683 = vpop.f32.mrb[0].mxu0
        %684 = vmatprep.mubr.f32.mxu0 0.0
        %685 = vmatmul.mubr.f32.gmra.mrb[0].mxu0 %v559
        %v686 = vpop.f32.mrb[0].mxu0
        %v687 = vadd.f32 0.0, %v686
        %v688 = vpop.f32.mrb[0].mxu0
        %689 = vmatprep.mubr.f32.mxu0 0.0
        %690 = vmatmul.mubr.f32.gmra.mrb[0].mxu0 %v562
        %v691 = vpop.f32.mrb[0].mxu0
        %v692 = vadd.f32 0.0, %v691
        %v693 = vpop.f32.mrb[0].mxu0
        %694 = vmatprep.mubr.f32.mxu0 0.0
        %695 = vmatmul.mubr.f32.gmra.mrb[0].mxu0 %v565
        %v696 = vpop.f32.mrb[0].mxu0
        %v697 = vadd.f32 0.0, %v696
        %v698 = vpop.f32.mrb[0].mxu0
        %699 = vmatprep.mubr.f32.mxu0 0.0
        %700 = vmatmul.mubr.f32.gmra.mrb[0].mxu0 %v568
        %v701 = vpop.f32.mrb[0].mxu0
        %v702 = vadd.f32 0.0, %v701
        %v703 = vpop.f32.mrb[0].mxu0
        %704 = vmatprep.mubr.f32.mxu0 0.0
        %705 = vmatmul.mubr.f32.gmra.mrb[0].mxu0 %v571
        %v706 = vpop.f32.mrb[0].mxu0
        %v707 = vadd.f32 0.0, %v706
        %v708 = vpop.f32.mrb[0].mxu0
        %709 = vmatprep.mubr.f32.mxu0 0.0
        %710 = vmatmul.mubr.f32.gmra.mrb[0].mxu0 %v574
        %v711 = vpop.f32.mrb[0].mxu0
        %v712 = vadd.f32 0.0, %v711
        %v713 = vpop.f32.mrb[0].mxu0
        %714 = vdwg.mxu0
        %v715 = vld [vmem:[%s2] sm:$0x1]
        %v717 = vlaneseq
        %v718 = vshrl.u32 %v717, 7
        %v719 = vsub.s32 0, %v718
        %v720 = vrot.slane %v715, %v719
        %v722 = vmul.f32 %v647, %v720
        %v723 = vmul.f32 %v652, %v720
        %v724 = vmul.f32 %v657, %v720
        %v725 = vmul.f32 %v662, %v720
        %v726 = vmul.f32 %v667, %v720
        %v727 = vmul.f32 %v672, %v720
        %v728 = vmul.f32 %v677, %v720
        %v729 = vmul.f32 %v682, %v720
        %v730 = vmul.f32 %v687, %v720
        %v731 = vmul.f32 %v692, %v720
        %v732 = vmul.f32 %v697, %v720
        %v733 = vmul.f32 %v702, %v720
        %v734 = vmul.f32 %v707, %v720
        %v735 = vmul.f32 %v712, %v720
        %v736 = vld [vmem:[%s3] sm:$0x1]
        %v738 = vlaneseq
        %v739 = vshrl.u32 %v738, 7
        %v740 = vsub.s32 0, %v739
        %v741 = vrot.slane %v736, %v740
        %v743 = vadd.f32 %v722, %v741
        %v744 = vadd.f32 %v723, %v741
        %v745 = vadd.f32 %v724, %v741
        %v746 = vadd.f32 %v725, %v741
        %v747 = vadd.f32 %v726, %v741
        %v748 = vadd.f32 %v727, %v741
        %v749 = vadd.f32 %v728, %v741
        %v750 = vadd.f32 %v729, %v741
        %v751 = vadd.f32 %v730, %v741
        %v752 = vadd.f32 %v731, %v741
        %v753 = vadd.f32 %v732, %v741
        %v754 = vadd.f32 %v733, %v741
        %v755 = vadd.f32 %v734, %v741
        %v756 = vadd.f32 %v735, %v741
        %v757 = vmax.f32 %v743, 0.0
        %v758 = vmax.f32 %v744, 0.0
        %v759 = vmax.f32 %v745, 0.0
        %v760 = vmax.f32 %v746, 0.0
        %v761 = vmax.f32 %v747, 0.0
        %v762 = vmax.f32 %v748, 0.0
        %v763 = vmax.f32 %v749, 0.0
        %v764 = vmax.f32 %v750, 0.0
        %v765 = vmax.f32 %v751, 0.0
        %v766 = vmax.f32 %v752, 0.0
        %v767 = vmax.f32 %v753, 0.0
        %v768 = vmax.f32 %v754, 0.0
        %v769 = vmax.f32 %v755, 0.0
        %v770 = vmax.f32 %v756, 0.0
        %v771 = vld [vmem:[#allocation3] sm:$0xff]
        %v772 = vld [vmem:[#allocation3 + $0x8] sm:$0xff]
        %v773 = vld [vmem:[#allocation3 + $0x10] sm:$0xff]
        %v774 = vld [vmem:[#allocation3 + $0x18] sm:$0xff]
        %v775 = vld [vmem:[#allocation3 + $0x20] sm:$0xff]
        %v776 = vld [vmem:[#allocation3 + $0x28] sm:$0xff]
        %v777 = vld [vmem:[#allocation3 + $0x30] sm:$0xff]
        %v778 = vld [vmem:[#allocation3 + $0x38] sm:$0xff]
        %v779 = vld [vmem:[#allocation3 + $0x40] sm:$0xff]
        %v780 = vld [vmem:[#allocation3 + $0x48] sm:$0xff]
        %v781 = vld [vmem:[#allocation3 + $0x50] sm:$0xff]
        %v782 = vld [vmem:[#allocation3 + $0x58] sm:$0xff]
        %v783 = vld [vmem:[#allocation3 + $0x60] sm:$0xff]
        %v784 = vld [vmem:[#allocation3 + $0x68] sm:$0xff]
        %v785 = vld [vmem:[#allocation3 + $0x70] sm:$0xff]
        %v786 = vld [vmem:[#allocation3 + $0x78] sm:$0xff]
        %v787 = vld [vmem:[#allocation3 + $0x80] sm:$0xff]
        %v788 = vld [vmem:[#allocation3 + $0x88] sm:$0xff]
        %v789 = vld [vmem:[#allocation3 + $0x90] sm:$0xff]
        %v790 = vld [vmem:[#allocation3 + $0x98] sm:$0xff]
        %v791 = vld [vmem:[#allocation3 + $0xa0] sm:$0xff]
        %v792 = vld [vmem:[#allocation3 + $0xa8] sm:$0xff]
        %v793 = vld [vmem:[#allocation3 + $0xb0] sm:$0xff]
        %v794 = vld [vmem:[#allocation3 + $0xb8] sm:$0xff]
        %v795 = vld [vmem:[#allocation3 + $0xc0] sm:$0xff]
        %v796 = vld [vmem:[#allocation3 + $0xc8] sm:$0xff]
        %v797 = vld [vmem:[#allocation3 + $0xd0] sm:$0xff]
        %v798 = vld [vmem:[#allocation3 + $0xd8] sm:$0xff]
        %v799 = vld [vmem:[#allocation3 + $0xe0] sm:$0xff]
        %v800 = vld [vmem:[#allocation3 + $0xe8] sm:$0xff]
        %v801 = vld [vmem:[#allocation3 + $0xf0] sm:$0xff]
        %v802 = vld [vmem:[#allocation3 + $0xf8] sm:$0xff]
        %v803 = vld [vmem:[#allocation3 + $0x100] sm:$0xff]
        %v804 = vld [vmem:[#allocation3 + $0x108] sm:$0xff]
        %v805 = vld [vmem:[#allocation3 + $0x110] sm:$0xff]
        %v806 = vld [vmem:[#allocation3 + $0x118] sm:$0xff]
        %v807 = vld [vmem:[#allocation3 + $0x120] sm:$0xff]
        %v808 = vld [vmem:[#allocation3 + $0x128] sm:$0xff]
        %v809 = vld [vmem:[#allocation3 + $0x130] sm:$0xff]
        %v810 = vld [vmem:[#allocation3 + $0x138] sm:$0xff]
        %v811 = vld [vmem:[#allocation3 + $0x140] sm:$0xff]
        %v812 = vld [vmem:[#allocation3 + $0x148] sm:$0xff]
        %v813 = vld [vmem:[#allocation3 + $0x150] sm:$0xff]
        %v814 = vld [vmem:[#allocation3 + $0x158] sm:$0xff]
        %v815 = vld [vmem:[#allocation3 + $0x160] sm:$0xff]
        %v816 = vld [vmem:[#allocation3 + $0x168] sm:$0xff]
        %v817 = vld [vmem:[#allocation3 + $0x170] sm:$0xff]
        %v818 = vld [vmem:[#allocation3 + $0x178] sm:$0xff]
        %819 = vmatprep.subr.mxu0 0.0
        %820 = vmatpush1.msra.mxu0 %v771
        %821 = vmatprep.subr.mxu0 0.0
        %822 = vmatpush1.msra.mxu0 %v772
        %823 = vmatprep.subr.mxu0 0.0
        %824 = vmatpush1.msra.mxu0 %v773
        %825 = vmatprep.subr.mxu0 0.0
        %826 = vmatpush1.msra.mxu0 %v774
        %827 = vmatprep.subr.mxu0 0.0
        %828 = vmatpush1.msra.mxu0 %v775
        %829 = vmatprep.subr.mxu0 0.0
        %830 = vmatpush1.msra.mxu0 %v776
        %831 = vmatprep.subr.mxu0 0.0
        %832 = vmatpush1.msra.mxu0 %v777
        %833 = vmatprep.subr.mxu0 0.0
        %834 = vmatpush1.msra.mxu0 %v778
        %835 = vmatprep.subr.mxu0 0.0
        %836 = vmatpush1.msra.mxu0 %v779
        %837 = vmatprep.subr.mxu0 0.0
        %838 = vmatpush1.msra.mxu0 %v780
        %839 = vmatprep.subr.mxu0 0.0
        %840 = vmatpush1.msra.mxu0 %v781
        %841 = vmatprep.subr.mxu0 0.0
        %842 = vmatpush1.msra.mxu0 %v782
        %843 = vmatprep.subr.mxu0 0.0
        %844 = vmatpush1.msra.mxu0 %v783
        %845 = vmatprep.subr.mxu0 0.0
        %846 = vmatpush1.msra.mxu0 %v784
        %847 = vmatprep.subr.mxu0 0.0
        %848 = vmatpush1.msra.mxu0 %v785
        %849 = vmatprep.subr.mxu0 0.0
        %850 = vmatpush1.msra.mxu0 %v786
        %851 = vmatprep.subr.mxu0 0.0
        %852 = vmatpush1.msra.mxu0 %v787
        %853 = vmatprep.subr.mxu0 0.0
        %854 = vmatpush1.msra.mxu0 %v788
        %855 = vmatprep.subr.mxu0 0.0
        %856 = vmatpush1.msra.mxu0 %v789
        %857 = vmatprep.subr.mxu0 0.0
        %858 = vmatpush1.msra.mxu0 %v790
        %859 = vmatprep.subr.mxu0 0.0
        %860 = vmatpush1.msra.mxu0 %v791
        %861 = vmatprep.subr.mxu0 0.0
        %862 = vmatpush1.msra.mxu0 %v792
        %863 = vmatprep.subr.mxu0 0.0
        %864 = vmatpush1.msra.mxu0 %v793
        %865 = vmatprep.subr.mxu0 0.0
        %866 = vmatpush1.msra.mxu0 %v794
        %867 = vmatprep.subr.mxu0 0.0
        %868 = vmatpush1.msra.mxu0 %v795
        %869 = vmatprep.subr.mxu0 0.0
        %870 = vmatpush1.msra.mxu0 %v796
        %871 = vmatprep.subr.mxu0 0.0
        %872 = vmatpush1.msra.mxu0 %v797
        %873 = vmatprep.subr.mxu0 0.0
        %874 = vmatpush1.msra.mxu0 %v798
        %875 = vmatprep.subr.mxu0 0.0
        %876 = vmatpush1.msra.mxu0 %v799
        %877 = vmatprep.subr.mxu0 0.0
        %878 = vmatpush1.msra.mxu0 %v800
        %879 = vmatprep.subr.mxu0 0.0
        %880 = vmatpush1.msra.mxu0 %v801
        %881 = vmatprep.subr.mxu0 0.0
        %882 = vmatpush1.msra.mxu0 %v802
        %883 = vmatprep.mubr.f32.mxu0 %v758
        %884 = vmatmul.mubr.f32.gmra.mrb[0].mxu0 %v757
        %v885 = vpop.f32.mrb[0].mxu0
        %v886 = vadd.f32 0.0, %v885
        %v887 = vpop.f32.mrb[0].mxu0
        %888 = vmatprep.mubr.f32.mxu0 %v759
        %889 = vmatmul.mubr.f32.gmra.mrb[0].mxu0 %v758
        %v890 = vpop.f32.mrb[0].mxu0
        %v891 = vadd.f32 0.0, %v890
        %v892 = vpop.f32.mrb[0].mxu0
        %893 = vmatprep.mubr.f32.mxu0 %v760
        %894 = vmatmul.mubr.f32.gmra.mrb[0].mxu0 %v759
        %v895 = vpop.f32.mrb[0].mxu0
        %v896 = vadd.f32 0.0, %v895
        %v897 = vpop.f32.mrb[0].mxu0
        %898 = vmatprep.mubr.f32.mxu0 %v761
        %899 = vmatmul.mubr.f32.gmra.mrb[0].mxu0 %v760
        %v900 = vpop.f32.mrb[0].mxu0
        %v901 = vadd.f32 0.0, %v900
        %v902 = vpop.f32.mrb[0].mxu0
        %903 = vmatprep.mubr.f32.mxu0 %v762
        %904 = vmatmul.mubr.f32.gmra.mrb[0].mxu0 %v761
        %v905 = vpop.f32.mrb[0].mxu0
        %v906 = vadd.f32 0.0, %v905
        %v907 = vpop.f32.mrb[0].mxu0
        %908 = vmatprep.mubr.f32.mxu0 %v763
        %909 = vmatmul.mubr.f32.gmra.mrb[0].mxu0 %v762
        %v910 = vpop.f32.mrb[0].mxu0
        %v911 = vadd.f32 0.0, %v910
        %v912 = vpop.f32.mrb[0].mxu0
        %913 = vmatprep.mubr.f32.mxu0 %v764
        %914 = vmatmul.mubr.f32.gmra.mrb[0].mxu0 %v763
        %v915 = vpop.f32.mrb[0].mxu0
        %v916 = vadd.f32 0.0, %v915
        %v917 = vpop.f32.mrb[0].mxu0
        %918 = vmatprep.mubr.f32.mxu0 %v765
        %919 = vmatmul.mubr.f32.gmra.mrb[0].mxu0 %v764
        %v920 = vpop.f32.mrb[0].mxu0
        %v921 = vadd.f32 0.0, %v920
        %v922 = vpop.f32.mrb[0].mxu0
        %923 = vmatprep.mubr.f32.mxu0 %v766
        %924 = vmatmul.mubr.f32.gmra.mrb[0].mxu0 %v765
        %v925 = vpop.f32.mrb[0].mxu0
        %v926 = vadd.f32 0.0, %v925
        %v927 = vpop.f32.mrb[0].mxu0
        %928 = vmatprep.mubr.f32.mxu0 %v767
        %929 = vmatmul.mubr.f32.gmra.mrb[0].mxu0 %v766
        %v930 = vpop.f32.mrb[0].mxu0
        %v931 = vadd.f32 0.0, %v930
        %v932 = vpop.f32.mrb[0].mxu0
        %933 = vmatprep.mubr.f32.mxu0 %v768
        %934 = vmatmul.mubr.f32.gmra.mrb[0].mxu0 %v767
        %v935 = vpop.f32.mrb[0].mxu0
        %v936 = vadd.f32 0.0, %v935
        %v937 = vpop.f32.mrb[0].mxu0
        %938 = vmatprep.mubr.f32.mxu0 %v769
        %939 = vmatmul.mubr.f32.gmra.mrb[0].mxu0 %v768
        %v940 = vpop.f32.mrb[0].mxu0
        %v941 = vadd.f32 0.0, %v940
        %v942 = vpop.f32.mrb[0].mxu0
        %943 = vdwg.mxu0
        %944 = vmatprep.subr.mxu0 0.0
        %945 = vmatpush1.msra.mxu0 %v803
        %946 = vmatprep.subr.mxu0 0.0
        %947 = vmatpush1.msra.mxu0 %v804
        %948 = vmatprep.subr.mxu0 0.0
        %949 = vmatpush1.msra.mxu0 %v805
        %950 = vmatprep.subr.mxu0 0.0
        %951 = vmatpush1.msra.mxu0 %v806
        %952 = vmatprep.subr.mxu0 0.0
        %953 = vmatpush1.msra.mxu0 %v807
        %954 = vmatprep.subr.mxu0 0.0
        %955 = vmatpush1.msra.mxu0 %v808
        %956 = vmatprep.subr.mxu0 0.0
        %957 = vmatpush1.msra.mxu0 %v809
        %958 = vmatprep.subr.mxu0 0.0
        %959 = vmatpush1.msra.mxu0 %v810
        %960 = vmatprep.subr.mxu0 0.0
        %961 = vmatpush1.msra.mxu0 %v811
        %962 = vmatprep.subr.mxu0 0.0
        %963 = vmatpush1.msra.mxu0 %v812
        %964 = vmatprep.subr.mxu0 0.0
        %965 = vmatpush1.msra.mxu0 %v813
        %966 = vmatprep.subr.mxu0 0.0
        %967 = vmatpush1.msra.mxu0 %v814
        %968 = vmatprep.subr.mxu0 0.0
        %969 = vmatpush1.msra.mxu0 %v815
        %970 = vmatprep.subr.mxu0 0.0
        %971 = vmatpush1.msra.mxu0 %v816
        %972 = vmatprep.subr.mxu0 0.0
        %973 = vmatpush1.msra.mxu0 %v817
        %974 = vmatprep.subr.mxu0 0.0
        %975 = vmatpush1.msra.mxu0 %v818
        %976 = vmatprep.subr.mxu0 0.0
        %977 = vmatpush1.msra.mxu0 0.0
        %978 = vmatprep.subr.mxu0 0.0
        %979 = vmatpush1.msra.mxu0 0.0
        %980 = vmatprep.subr.mxu0 0.0
        %981 = vmatpush1.msra.mxu0 0.0
        %982 = vmatprep.subr.mxu0 0.0
        %983 = vmatpush1.msra.mxu0 0.0
        %984 = vmatprep.subr.mxu0 0.0
        %985 = vmatpush1.msra.mxu0 0.0
        %986 = vmatprep.subr.mxu0 0.0
        %987 = vmatpush1.msra.mxu0 0.0
        %988 = vmatprep.subr.mxu0 0.0
        %989 = vmatpush1.msra.mxu0 0.0
        %990 = vmatprep.subr.mxu0 0.0
        %991 = vmatpush1.msra.mxu0 0.0
        %992 = vmatprep.subr.mxu0 0.0
        %993 = vmatpush1.msra.mxu0 0.0
        %994 = vmatprep.subr.mxu0 0.0
        %995 = vmatpush1.msra.mxu0 0.0
        %996 = vmatprep.subr.mxu0 0.0
        %997 = vmatpush1.msra.mxu0 0.0
        %998 = vmatprep.subr.mxu0 0.0
        %999 = vmatpush1.msra.mxu0 0.0
        %1000 = vmatprep.subr.mxu0 0.0
        %1001 = vmatpush1.msra.mxu0 0.0
        %1002 = vmatprep.subr.mxu0 0.0
        %1003 = vmatpush1.msra.mxu0 0.0
        %1004 = vmatprep.subr.mxu0 0.0
        %1005 = vmatpush1.msra.mxu0 0.0
        %1006 = vmatprep.subr.mxu0 0.0
        %1007 = vmatpush1.msra.mxu0 0.0
        %1008 = vmatprep.mubr.f32.mxu0 0.0
        %1009 = vmatmul.mubr.f32.gmra.mrb[0].mxu0 %v759
        %v1010 = vpop.f32.mrb[0].mxu0
        %v1011 = vadd.f32 %v886, %v1010
        %v1012 = vpop.f32.mrb[0].mxu0
        %1013 = vmatprep.mubr.f32.mxu0 0.0
        %1014 = vmatmul.mubr.f32.gmra.mrb[0].mxu0 %v760
        %v1015 = vpop.f32.mrb[0].mxu0
        %v1016 = vadd.f32 %v891, %v1015
        %v1017 = vpop.f32.mrb[0].mxu0
        %1018 = vmatprep.mubr.f32.mxu0 0.0
        %1019 = vmatmul.mubr.f32.gmra.mrb[0].mxu0 %v761
        %v1020 = vpop.f32.mrb[0].mxu0
        %v1021 = vadd.f32 %v896, %v1020
        %v1022 = vpop.f32.mrb[0].mxu0
        %1023 = vmatprep.mubr.f32.mxu0 0.0
        %1024 = vmatmul.mubr.f32.gmra.mrb[0].mxu0 %v762
        %v1025 = vpop.f32.mrb[0].mxu0
        %v1026 = vadd.f32 %v901, %v1025
        %v1027 = vpop.f32.mrb[0].mxu0
        %1028 = vmatprep.mubr.f32.mxu0 0.0
        %1029 = vmatmul.mubr.f32.gmra.mrb[0].mxu0 %v763
        %v1030 = vpop.f32.mrb[0].mxu0
        %v1031 = vadd.f32 %v906, %v1030
        %v1032 = vpop.f32.mrb[0].mxu0
        %1033 = vmatprep.mubr.f32.mxu0 0.0
        %1034 = vmatmul.mubr.f32.gmra.mrb[0].mxu0 %v764
        %v1035 = vpop.f32.mrb[0].mxu0
        %v1036 = vadd.f32 %v911, %v1035
        %v1037 = vpop.f32.mrb[0].mxu0
        %1038 = vmatprep.mubr.f32.mxu0 0.0
        %1039 = vmatmul.mubr.f32.gmra.mrb[0].mxu0 %v765
        %v1040 = vpop.f32.mrb[0].mxu0
        %v1041 = vadd.f32 %v916, %v1040
        %v1042 = vpop.f32.mrb[0].mxu0
        %1043 = vmatprep.mubr.f32.mxu0 0.0
        %1044 = vmatmul.mubr.f32.gmra.mrb[0].mxu0 %v766
        %v1045 = vpop.f32.mrb[0].mxu0
        %v1046 = vadd.f32 %v921, %v1045
        %v1047 = vpop.f32.mrb[0].mxu0
        %1048 = vmatprep.mubr.f32.mxu0 0.0
        %1049 = vmatmul.mubr.f32.gmra.mrb[0].mxu0 %v767
        %v1050 = vpop.f32.mrb[0].mxu0
        %v1051 = vadd.f32 %v926, %v1050
        %v1052 = vpop.f32.mrb[0].mxu0
        %1053 = vmatprep.mubr.f32.mxu0 0.0
        %1054 = vmatmul.mubr.f32.gmra.mrb[0].mxu0 %v768
        %v1055 = vpop.f32.mrb[0].mxu0
        %v1056 = vadd.f32 %v931, %v1055
        %v1057 = vpop.f32.mrb[0].mxu0
        %1058 = vmatprep.mubr.f32.mxu0 0.0
        %1059 = vmatmul.mubr.f32.gmra.mrb[0].mxu0 %v769
        %v1060 = vpop.f32.mrb[0].mxu0
        %v1061 = vadd.f32 %v936, %v1060
        %v1062 = vpop.f32.mrb[0].mxu0
        %1063 = vmatprep.mubr.f32.mxu0 0.0
        %1064 = vmatmul.mubr.f32.gmra.mrb[0].mxu0 %v770
        %v1065 = vpop.f32.mrb[0].mxu0
        %v1066 = vadd.f32 %v941, %v1065
        %v1067 = vpop.f32.mrb[0].mxu0
        %1068 = vdwg.mxu0
        %v1069 = vld [vmem:[%s5] sm:$0x1]
        %v1071 = vlaneseq
        %v1072 = vshrl.u32 %v1071, 7
        %v1073 = vsub.s32 0, %v1072
        %v1074 = vrot.slane %v1069, %v1073
        %v1076 = vmul.f32 %v1011, %v1074
        %v1077 = vmul.f32 %v1016, %v1074
        %v1078 = vmul.f32 %v1021, %v1074
        %v1079 = vmul.f32 %v1026, %v1074
        %v1080 = vmul.f32 %v1031, %v1074
        %v1081 = vmul.f32 %v1036, %v1074
        %v1082 = vmul.f32 %v1041, %v1074
        %v1083 = vmul.f32 %v1046, %v1074
        %v1084 = vmul.f32 %v1051, %v1074
        %v1085 = vmul.f32 %v1056, %v1074
        %v1086 = vmul.f32 %v1061, %v1074
        %v1087 = vmul.f32 %v1066, %v1074
        %v1088 = vld [vmem:[%s6] sm:$0x1]
        %v1090 = vlaneseq
        %v1091 = vshrl.u32 %v1090, 7
        %v1092 = vsub.s32 0, %v1091
        %v1093 = vrot.slane %v1088, %v1092
        %v1095 = vadd.f32 %v1076, %v1093
        %v1096 = vadd.f32 %v1077, %v1093
        %v1097 = vadd.f32 %v1078, %v1093
        %v1098 = vadd.f32 %v1079, %v1093
        %v1099 = vadd.f32 %v1080, %v1093
        %v1100 = vadd.f32 %v1081, %v1093
        %v1101 = vadd.f32 %v1082, %v1093
        %v1102 = vadd.f32 %v1083, %v1093
        %v1103 = vadd.f32 %v1084, %v1093
        %v1104 = vadd.f32 %v1085, %v1093
        %v1105 = vadd.f32 %v1086, %v1093
        %v1106 = vadd.f32 %v1087, %v1093
        %v1107 = vmax.f32 %v1095, 0.0
        %v1108 = vmax.f32 %v1096, 0.0
        %v1109 = vmax.f32 %v1097, 0.0
        %v1110 = vmax.f32 %v1098, 0.0
        %v1111 = vmax.f32 %v1099, 0.0
        %v1112 = vmax.f32 %v1100, 0.0
        %v1113 = vmax.f32 %v1101, 0.0
        %v1114 = vmax.f32 %v1102, 0.0
        %v1115 = vmax.f32 %v1103, 0.0
        %v1116 = vmax.f32 %v1104, 0.0
        %v1117 = vmax.f32 %v1105, 0.0
        %v1118 = vmax.f32 %v1106, 0.0
        %v1119 = vmax.f32 %v1107, %v1108
        %v1120 = vmax.f32 %v1109, %v1110
        %v1121 = vmax.f32 %v1111, %v1112
        %v1122 = vmax.f32 %v1113, %v1114
        %v1123 = vmax.f32 %v1115, %v1116
        %v1124 = vmax.f32 %v1117, %v1118
        %1125 = vst [vmem:[%s385] sm:$0xff] %v1119
        %1126 = vst [vmem:[%s385 + $0x8] sm:$0xff] %v1120
        %1127 = vst [vmem:[%s385 + $0x10] sm:$0xff] %v1121
        %1128 = vst [vmem:[%s385 + $0x18] sm:$0xff] %v1122
        %1129 = vst [vmem:[%s385 + $0x20] sm:$0xff] %v1123
        %1130 = vst [vmem:[%s385 + $0x28] sm:$0xff] %v1124
        %s1131 = sand.u32 %s182, 1
        %s1132 = scalar_lea.sflag [#allocation5], %s1131
        %s1133 = sand.u32 %s182, 1
        %s1134 = smul.addr %s1133, 48
        %s1135 = scalar_lea.vmem [#allocation6], %s1134
        // Predicated region
        $region91: #{tpu_custom_call.1} parent=81 // pred_check
          %p1136 = pneg %p192
        $region92: #{tpu_custom_call.1} parent=81 // pred_check_branch
          %1138 = sbr.rel (%p1136) target = $region94
        $region93: #{tpu_custom_call.1} parent=81 // pred_region
          %s1140 = ssub.s32 768, 768
          %1141 = vsyncadd %s1132, %s1140
          %s1142 = smul.addr %s22, 128
          %s1143 = scalar_lea.hbm %s7, %s1142
          %s1144 = sshll.u32 %s1135, 4
          %s1145 = int_to_ptr.vmem [resolvable:$true] %s1144
          %1150 = dma.vmem_to_hbm [thread:$0]  %s1145, 768, %s1143, %s1132, 128, 256, 8
        $region94: #{tpu_custom_call.1} parent=81 // pred_fallthru
          _
      $region82: #{tpu_custom_call.1} parent=5 // pred_fallthru
        _
      %p1151 = scmp.le.s32.totalorder 2, %s17
      // Predicated region
      $region95: #{tpu_custom_call.1} parent=5 // pred_check
        %p1152 = pneg %p1151
      $region96: #{tpu_custom_call.1} parent=5 // pred_check_branch
        %1154 = sbr.rel (%p1152) target = $region98
      $region97: #{tpu_custom_call.1} parent=5 // pred_region
        %s1155 = ssub.s32 %s17, 2
        // Predicated region
        $region99: #{tpu_custom_call.1} parent=97 // pred_check
          %p1156 = pneg %p198
        $region100: #{tpu_custom_call.1} parent=97 // pred_check_branch
          %1158 = sbr.rel (%p1156) target = $region102
        $region101: #{tpu_custom_call.1} parent=97 // pred_region
          %s1159 = sand.u32 %s183, 1
          %s1160 = scalar_lea.sflag [#allocation5], %s1159
          %s1161 = sand.u32 %s183, 1
          %s1162 = smul.addr %s1161, 48
          %s1163 = scalar_lea.vmem [#allocation6], %s1162
          %1164 = dma.done %s1160, 768
        $region102: #{tpu_custom_call.1} parent=97 // pred_fallthru
          _
      $region98: #{tpu_custom_call.1} parent=5 // pred_fallthru
        _
    $region6: #{tpu_custom_call.1} parent=1 // loop_footer
      %s21 = sadd.s32 1, %s17
    $region7: #{tpu_custom_call.1} parent=1 // loop_footer_branch
      %16 = sbr.rel target = $region3
    $region8: #{tpu_custom_call.1} parent=1 // loop_exit
      _
    %1165 = vsyncpa [#allocation4], 1
    %s1166 = scalar_lea.sflag [#allocation4], 1
    %1167 = vsyncpa %s1166, 1
    %1168 = vsyncpa [#allocation5], 1
    %s1169 = scalar_lea.sflag [#allocation5], 1
    %1170 = vsyncpa %s1169, 1

</llo_original>
